<compile_context>
chip_gen: v6e
topology: v6e:2x2x1
jax: 0.10.0
libtpu: 0.0.40
codegen_flags: <defaults>
</compile_context>

<pallas_src>
import functools
import math

import jax
import jax.numpy as jnp
from jax.experimental import pallas as pl
from jax.experimental.pallas import tpu as pltpu


def _pm_kernel(x_ref, we_ref, be_ref, wd_ref, bd_ref, t_ref,
               enc_ref, dec_ref, loss_ref, *, inv_n):
    """Fused encoder matmul -> leaky_relu -> decoder matmul -> MSE loss (all f32)."""
    # Encoder Linear: f32 operands, f32 accumulate on the MXU.
    h = jnp.dot(x_ref[...], we_ref[...], preferred_element_type=jnp.float32)
    h = h + be_ref[...]                           # bias add (VPU, f32)
    h = jnp.maximum(h, 0.01 * h)                  # leaky_relu (mul+max, no cmp+select)
    enc_ref[...] = h                              # native-width (B, hid) store
    # Decoder Linear, 'none' output nonlinearity.
    d = jnp.dot(h, wd_ref[...], preferred_element_type=jnp.float32)
    d = d + bd_ref[...]
    dec_ref[...] = d
    # MSE loss: sum of squares * precomputed 1/(B*D_out), scalar to SMEM.
    diff = d - t_ref[...]
    loss_ref[0, 0] = jnp.sum(diff * diff) * inv_n


def pattern_mapper_forward(x_nchw, targets, we_t, be, wd_t, bd):
    """Eval-mode forward.
       x_nchw : [B, C, H, W] f32 inputs
       targets: [B, D_out]   f32 targets
       we_t   : [D_in, HID]  encoder weight (pre-transposed), be: [1, HID]
       wd_t   : [HID, D_out] decoder weight (pre-transposed), bd: [1, D_out]
    """
    B = x_nchw.shape[0]
    D_in = x_nchw.shape[1] * x_nchw.shape[2] * x_nchw.shape[3]
    hid = we_t.shape[1]
    D_out = wd_t.shape[1]

    # Flatten NCHW row-major, exactly like torch .flatten(1).
    x_flat = x_nchw.reshape(B, D_in)
    t_flat = targets.reshape(B, D_out)

    inv_n = 1.0 / float(B * D_out)

    full = lambda shape: pl.BlockSpec(shape, lambda: (0,) * len(shape))

    # Advisory cost estimate with the true (unpadded) widths.
    flops = 2 * B * (D_in * hid + hid * D_out)
    bytes_accessed = 4 * (x_flat.size + we_t.size + be.size + wd_t.size +
                          bd.size + t_flat.size + B * hid + B * D_out + 1)

    enc, dec, loss = pl.pallas_call(
        functools.partial(_pm_kernel, inv_n=inv_n),
        out_shape=(
            jax.ShapeDtypeStruct((B, hid), jnp.float32),
            jax.ShapeDtypeStruct((B, D_out), jnp.float32),
            jax.ShapeDtypeStruct((1, 1), jnp.float32),
        ),
        in_specs=[
            full((B, D_in)),
            full((D_in, hid)),
            full((1, hid)),
            full((hid, D_out)),
            full((1, D_out)),
            full((B, D_out)),
        ],
        out_specs=(
            full((B, hid)),
            full((B, D_out)),
            pl.BlockSpec(memory_space=pltpu.MemorySpace.SMEM),  # scalar loss -> SMEM
        ),
        cost_estimate=pl.CostEstimate(flops=flops, transcendentals=0,
                                      bytes_accessed=bytes_accessed),
    )(x_flat, we_t, be, wd_t, bd, t_flat)

    loss = loss.reshape(())
    outputs = {'encoding': enc, 'decoding': dec, 'output': enc}
    return loss, outputs


def _init_linear(key, fan_in, fan_out):
    """Deterministic init mimicking nn.Linear default (uniform +/- 1/sqrt(fan_in)).
       Returns weight already transposed to [fan_in, fan_out] plus bias [1, fan_out]."""
    bound = 1.0 / math.sqrt(fan_in)
    kw, kb = jax.random.split(key)
    w_t = jax.random.uniform(kw, (fan_in, fan_out), jnp.float32, -bound, bound)
    b = jax.random.uniform(kb, (1, fan_out), jnp.float32, -bound, bound)
    return w_t, b


if __name__ == "__main__":
    key = jax.random.PRNGKey(0)
    k_x, k_t, k_enc, k_dec = jax.random.split(key, 4)

    # Small shapes consistent with the module:
    #   inputs  NCHW [2, 4, 16, 16] -> flattened input_size = 1024
    #   targets      [2, 128]       -> target/output size   = 128
    #   hidden units (config['num_units']) = 32
    B, C, Hh, W = 2, 4, 16, 16
    D_in = C * Hh * W
    HID = 32
    D_out = 128

    x = jax.random.normal(k_x, (B, C, Hh, W), jnp.float32)
    targets = jax.random.normal(k_t, (B, D_out), jnp.float32)

    we_t, be = _init_linear(k_enc, D_in, HID)    # encoder Linear(D_in -> HID)
    wd_t, bd = _init_linear(k_dec, HID, D_out)   # decoder Linear(HID -> D_out)

    fwd = jax.jit(pattern_mapper_forward)
    loss, outputs = fwd(x, targets, we_t, be, wd_t, bd)
    jax.block_until_ready((loss, outputs))

    # Pure-JAX f32 reference (highest matmul precision as ground truth).
    x_flat = x.reshape(B, D_in)
    h_ref = jnp.dot(x_flat, we_t, precision=jax.lax.Precision.HIGHEST) + be
    h_ref = jnp.maximum(h_ref, 0.01 * h_ref)
    d_ref = jnp.dot(h_ref, wd_t, precision=jax.lax.Precision.HIGHEST) + bd
    loss_ref = jnp.mean((d_ref - targets) ** 2)

    assert outputs['encoding'].shape == (B, HID)
    assert outputs['output'].shape == (B, HID)
    assert outputs['decoding'].shape == (B, D_out)
    assert jnp.allclose(outputs['encoding'], h_ref, atol=3e-2, rtol=3e-2)
    assert jnp.allclose(outputs['decoding'], d_ref, atol=3e-2, rtol=3e-2)
    assert jnp.allclose(loss, loss_ref, atol=3e-2, rtol=3e-2)

    print("KERNEL_OK")
</pallas_src>

<mosaic_0001>
module attributes {stable_mosaic.version = 11 : i64} {
  func.func @_pm_kernel(%arg0: memref<2x1024xf32, #tpu.memory_space<vmem>>, %arg1: memref<1024x32xf32, #tpu.memory_space<vmem>>, %arg2: memref<1x32xf32, #tpu.memory_space<vmem>>, %arg3: memref<32x128xf32, #tpu.memory_space<vmem>>, %arg4: memref<1x128xf32, #tpu.memory_space<vmem>>, %arg5: memref<2x128xf32, #tpu.memory_space<vmem>>, %arg6: memref<2x32xf32, #tpu.memory_space<vmem>>, %arg7: memref<2x128xf32, #tpu.memory_space<vmem>>, %arg8: memref<1x1xf32, #tpu.memory_space<smem>>) attributes {dimension_semantics = [], scalar_prefetch = 0 : i64, scratch_operands = 0 : i64, tpu.core_type = #tpu.core_type<tc>} {
    %c0 = arith.constant 0 : index
    %c0_0 = arith.constant 0 : index
    %0 = vector.load %arg0[%c0, %c0_0] : memref<2x1024xf32, #tpu.memory_space<vmem>>, vector<2x1024xf32>
    %c0_1 = arith.constant 0 : index
    %c0_2 = arith.constant 0 : index
    %1 = vector.load %arg1[%c0_1, %c0_2] : memref<1024x32xf32, #tpu.memory_space<vmem>>, vector<1024x32xf32>
    %cst = arith.constant dense<0.000000e+00> : vector<2x32xf32>
    %2 = tpu.matmul %0, %1, %cst {dimension_numbers = #tpu.dot_dimension_numbers<[1], [0], [0], [1], [0, 0, 1, 1], [], []>} : vector<2x1024xf32>, vector<1024x32xf32>, vector<2x32xf32> -> vector<2x32xf32>
    %c0_3 = arith.constant 0 : index
    %c0_4 = arith.constant 0 : index
    %3 = vector.load %arg2[%c0_3, %c0_4] : memref<1x32xf32, #tpu.memory_space<vmem>>, vector<1x32xf32>
    %4 = vector.broadcast %3 : vector<1x32xf32> to vector<2x32xf32>
    %5 = arith.addf %2, %4 : vector<2x32xf32>
    %cst_5 = arith.constant 0.00999999977 : f32
    %6 = vector.broadcast %cst_5 : f32 to vector<2x32xf32>
    %7 = arith.mulf %6, %5 : vector<2x32xf32>
    %8 = arith.maximumf %5, %7 : vector<2x32xf32>
    %c0_6 = arith.constant 0 : index
    %c0_7 = arith.constant 0 : index
    %9 = vector.load %arg6[%c0_6, %c0_7] : memref<2x32xf32, #tpu.memory_space<vmem>>, vector<2x32xf32>
    tpu.vector_store %arg6[%c0_6, %c0_7], %8 {strides = array<i32>} : memref<2x32xf32, #tpu.memory_space<vmem>>, vector<2x32xf32>,
    %c0_8 = arith.constant 0 : index
    %c0_9 = arith.constant 0 : index
    %10 = vector.load %arg3[%c0_8, %c0_9] : memref<32x128xf32, #tpu.memory_space<vmem>>, vector<32x128xf32>
    %cst_10 = arith.constant dense<0.000000e+00> : vector<2x128xf32>
    %11 = tpu.matmul %8, %10, %cst_10 {dimension_numbers = #tpu.dot_dimension_numbers<[1], [0], [0], [1], [0, 0, 1, 1], [], []>} : vector<2x32xf32>, vector<32x128xf32>, vector<2x128xf32> -> vector<2x128xf32>
    %c0_11 = arith.constant 0 : index
    %c0_12 = arith.constant 0 : index
    %12 = vector.load %arg4[%c0_11, %c0_12] : memref<1x128xf32, #tpu.memory_space<vmem>>, vector<1x128xf32>
    %13 = vector.broadcast %12 : vector<1x128xf32> to vector<2x128xf32>
    %14 = arith.addf %11, %13 : vector<2x128xf32>
    %c0_13 = arith.constant 0 : index
    %c0_14 = arith.constant 0 : index
    %15 = vector.load %arg7[%c0_13, %c0_14] : memref<2x128xf32, #tpu.memory_space<vmem>>, vector<2x128xf32>
    tpu.vector_store %arg7[%c0_13, %c0_14], %14 {strides = array<i32>} : memref<2x128xf32, #tpu.memory_space<vmem>>, vector<2x128xf32>,
    %c0_15 = arith.constant 0 : index
    %c0_16 = arith.constant 0 : index
    %16 = vector.load %arg5[%c0_15, %c0_16] : memref<2x128xf32, #tpu.memory_space<vmem>>, vector<2x128xf32>
    %17 = arith.subf %14, %16 : vector<2x128xf32>
    %18 = arith.mulf %17, %17 : vector<2x128xf32>
    %19 = vector.shape_cast %18 : vector<2x128xf32> to vector<1x2x128xf32>
    %cst_17 = arith.constant dense<0.000000e+00> : vector<1xf32>
    %20 = vector.multi_reduction <add>, %19, %cst_17 [1, 2] : vector<1x2x128xf32> to vector<1xf32>
    %21 = vector.shape_cast %20 : vector<1xf32> to vector<1x1x1xf32>
    %22 = vector.extract %21[0, 0, 0] : f32 from vector<1x1x1xf32>
    %cst_18 = arith.constant 3.906250e-03 : f32
    %23 = arith.mulf %22, %cst_18 : f32
    %c0_19 = arith.constant 0 : index
    %c0_20 = arith.constant 0 : index
    %24 = memref.load %arg8[%c0_19, %c0_20] : memref<1x1xf32, #tpu.memory_space<smem>>
    memref.store %23, %arg8[%c0_19, %c0_20] : memref<1x1xf32, #tpu.memory_space<smem>>
    return
  }
}

</mosaic_0001>

<llo_original>
// kernel: pattern_mapper_forward.1
$region0: #{pattern_mapper_forward.1}
  #allocation0 [shape = 'u32[]', space=smem, size = 0x4, offset = 0x4, fixed_abs, tag = 'smem constant byte address 0x4 - core index']
  #allocation1 [shape = 'u32[144,128]{1,0:T(1,128)}', space=vmem, size = 0x12000, scoped, tag = 'internal scratch']
  %s0 = inlined_call_operand.vmem [shape: f32[2,1024], index: 0, kind: input, shape index: {}]
  %s1 = inlined_call_operand.vmem [shape: f32[1024,32], index: 1, kind: input, shape index: {}]
  %s2 = inlined_call_operand.vmem [shape: f32[1,32], index: 2, kind: input, shape index: {}]
  %s3 = inlined_call_operand.vmem [shape: f32[32,128], index: 3, kind: input, shape index: {}]
  %s4 = inlined_call_operand.vmem [shape: f32[1,128], index: 4, kind: input, shape index: {}]
  %s5 = inlined_call_operand.vmem [shape: f32[2,128], index: 5, kind: input, shape index: {}]
  %s6 = inlined_call_operand.vmem [shape: f32[2,32], index: 6, kind: output, shape index: {0}]
  %s7 = inlined_call_operand.hbm [shape: f32[2,128], index: 7, kind: output, shape index: {1}]
  %s8 = inlined_call_operand.hbm [shape: f32[1,1], index: 8, kind: output, shape index: {2}]
  %9 = xla_tuple %s6, %s7, %s8
  %s10 = sld [smem:[#allocation0]]
  $region50: #{pattern_mapper_forward.1} parent=0
    _
  %s12 = ssub.s32 1, %s10
  %s13 = scalar_select 0, %s12, %s10
  $region1: #{pattern_mapper_forward.1} parent=0
    #allocation2 [shape = 'u8[1024]{0}', space=vmem, size = 0x400, scoped, tag = 'output window, operand 1, single buffered']
    #allocation3 [shape = 's32[1]{0}', space=sflag, size = 0x4, scoped, tag = 'scoped memory for pattern_mapper_forward.1']
    #allocation4 [shape = 's32[1]{0}', space=sflag, size = 0x4, scoped, tag = 'scoped memory for pattern_mapper_forward.1']
    #allocation5 [shape = 'u8[512]{0}', space=smem, size = 0x200, scoped, tag = 'output window, operand 2, single buffered']
    %14 = vsyncpa [#allocation3], 0
    %15 = vsyncpa [#allocation4], 0
    // Predicated region
    $region2: #{pattern_mapper_forward.1} parent=1 // pred_check
      _
    $region3: #{pattern_mapper_forward.1} parent=1 // pred_check_branch
      %17 = sbr.rel (0) target = $region5
    $region4: #{pattern_mapper_forward.1} parent=1 // pred_region
      _
    $region5: #{pattern_mapper_forward.1} parent=1 // pred_fallthru
      _
    // Predicated region
    $region6: #{pattern_mapper_forward.1} parent=1 // pred_check
      _
    $region7: #{pattern_mapper_forward.1} parent=1 // pred_check_branch
      %19 = sbr.rel (0) target = $region9
    $region8: #{pattern_mapper_forward.1} parent=1 // pred_region
      _
    $region9: #{pattern_mapper_forward.1} parent=1 // pred_fallthru
      _
    // Predicated region
    $region10: #{pattern_mapper_forward.1} parent=1 // pred_check
      _
    $region11: #{pattern_mapper_forward.1} parent=1 // pred_check_branch
      %21 = sbr.rel (0) target = $region13
    $region12: #{pattern_mapper_forward.1} parent=1 // pred_region
      _
    $region13: #{pattern_mapper_forward.1} parent=1 // pred_fallthru
      _
    // Predicated region
    $region14: #{pattern_mapper_forward.1} parent=1 // pred_check
      _
    $region15: #{pattern_mapper_forward.1} parent=1 // pred_check_branch
      %23 = sbr.rel (0) target = $region17
    $region16: #{pattern_mapper_forward.1} parent=1 // pred_region
      _
    $region17: #{pattern_mapper_forward.1} parent=1 // pred_fallthru
      _
    // Predicated region
    $region18: #{pattern_mapper_forward.1} parent=1 // pred_check
      _
    $region19: #{pattern_mapper_forward.1} parent=1 // pred_check_branch
      %25 = sbr.rel (0) target = $region21
    $region20: #{pattern_mapper_forward.1} parent=1 // pred_region
      _
    $region21: #{pattern_mapper_forward.1} parent=1 // pred_fallthru
      _
    // Predicated region
    $region22: #{pattern_mapper_forward.1} parent=1 // pred_check
      _
    $region23: #{pattern_mapper_forward.1} parent=1 // pred_check_branch
      %27 = sbr.rel (0) target = $region25
    $region24: #{pattern_mapper_forward.1} parent=1 // pred_region
      _
    $region25: #{pattern_mapper_forward.1} parent=1 // pred_fallthru
      _
    %v28 = vld [vmem:[%s0] sm:$0xff]
    %v29 = vld [vmem:[%s0 + $0x8] sm:$0xff]
    %v30 = vld [vmem:[%s1] sm:$0xff]
    %v31 = vld [vmem:[%s1 + $0x8] sm:$0xff]
    %v32 = vld [vmem:[%s1 + $0x10] sm:$0xff]
    %v33 = vld [vmem:[%s1 + $0x18] sm:$0xff]
    %v34 = vld [vmem:[%s1 + $0x20] sm:$0xff]
    %v35 = vld [vmem:[%s1 + $0x28] sm:$0xff]
    %v36 = vld [vmem:[%s1 + $0x30] sm:$0xff]
    %v37 = vld [vmem:[%s1 + $0x38] sm:$0xff]
    %v38 = vld [vmem:[%s1 + $0x40] sm:$0xff]
    %v39 = vld [vmem:[%s1 + $0x48] sm:$0xff]
    %v40 = vld [vmem:[%s1 + $0x50] sm:$0xff]
    %v41 = vld [vmem:[%s1 + $0x58] sm:$0xff]
    %v42 = vld [vmem:[%s1 + $0x60] sm:$0xff]
    %v43 = vld [vmem:[%s1 + $0x68] sm:$0xff]
    %v44 = vld [vmem:[%s1 + $0x70] sm:$0xff]
    %v45 = vld [vmem:[%s1 + $0x78] sm:$0xff]
    %v46 = vld [vmem:[%s1 + $0x80] sm:$0xff]
    %v47 = vld [vmem:[%s1 + $0x88] sm:$0xff]
    %v48 = vld [vmem:[%s1 + $0x90] sm:$0xff]
    %v49 = vld [vmem:[%s1 + $0x98] sm:$0xff]
    %v50 = vld [vmem:[%s1 + $0xa0] sm:$0xff]
    %v51 = vld [vmem:[%s1 + $0xa8] sm:$0xff]
    %v52 = vld [vmem:[%s1 + $0xb0] sm:$0xff]
    %v53 = vld [vmem:[%s1 + $0xb8] sm:$0xff]
    %v54 = vld [vmem:[%s1 + $0xc0] sm:$0xff]
    %v55 = vld [vmem:[%s1 + $0xc8] sm:$0xff]
    %v56 = vld [vmem:[%s1 + $0xd0] sm:$0xff]
    %v57 = vld [vmem:[%s1 + $0xd8] sm:$0xff]
    %v58 = vld [vmem:[%s1 + $0xe0] sm:$0xff]
    %v59 = vld [vmem:[%s1 + $0xe8] sm:$0xff]
    %v60 = vld [vmem:[%s1 + $0xf0] sm:$0xff]
    %v61 = vld [vmem:[%s1 + $0xf8] sm:$0xff]
    %v62 = vld [vmem:[%s1 + $0x100] sm:$0xff]
    %v63 = vld [vmem:[%s1 + $0x108] sm:$0xff]
    %v64 = vld [vmem:[%s1 + $0x110] sm:$0xff]
    %v65 = vld [vmem:[%s1 + $0x118] sm:$0xff]
    %v66 = vld [vmem:[%s1 + $0x120] sm:$0xff]
    %v67 = vld [vmem:[%s1 + $0x128] sm:$0xff]
    %v68 = vld [vmem:[%s1 + $0x130] sm:$0xff]
    %v69 = vld [vmem:[%s1 + $0x138] sm:$0xff]
    %v70 = vld [vmem:[%s1 + $0x140] sm:$0xff]
    %v71 = vld [vmem:[%s1 + $0x148] sm:$0xff]
    %v72 = vld [vmem:[%s1 + $0x150] sm:$0xff]
    %v73 = vld [vmem:[%s1 + $0x158] sm:$0xff]
    %v74 = vld [vmem:[%s1 + $0x160] sm:$0xff]
    %v75 = vld [vmem:[%s1 + $0x168] sm:$0xff]
    %v76 = vld [vmem:[%s1 + $0x170] sm:$0xff]
    %v77 = vld [vmem:[%s1 + $0x178] sm:$0xff]
    %v78 = vld [vmem:[%s1 + $0x180] sm:$0xff]
    %v79 = vld [vmem:[%s1 + $0x188] sm:$0xff]
    %v80 = vld [vmem:[%s1 + $0x190] sm:$0xff]
    %v81 = vld [vmem:[%s1 + $0x198] sm:$0xff]
    %v82 = vld [vmem:[%s1 + $0x1a0] sm:$0xff]
    %v83 = vld [vmem:[%s1 + $0x1a8] sm:$0xff]
    %v84 = vld [vmem:[%s1 + $0x1b0] sm:$0xff]
    %v85 = vld [vmem:[%s1 + $0x1b8] sm:$0xff]
    %v86 = vld [vmem:[%s1 + $0x1c0] sm:$0xff]
    %v87 = vld [vmem:[%s1 + $0x1c8] sm:$0xff]
    %v88 = vld [vmem:[%s1 + $0x1d0] sm:$0xff]
    %v89 = vld [vmem:[%s1 + $0x1d8] sm:$0xff]
    %v90 = vld [vmem:[%s1 + $0x1e0] sm:$0xff]
    %v91 = vld [vmem:[%s1 + $0x1e8] sm:$0xff]
    %v92 = vld [vmem:[%s1 + $0x1f0] sm:$0xff]
    %v93 = vld [vmem:[%s1 + $0x1f8] sm:$0xff]
    %v94 = vld [vmem:[%s1 + $0x200] sm:$0xff]
    %v95 = vld [vmem:[%s1 + $0x208] sm:$0xff]
    %v96 = vld [vmem:[%s1 + $0x210] sm:$0xff]
    %v97 = vld [vmem:[%s1 + $0x218] sm:$0xff]
    %v98 = vld [vmem:[%s1 + $0x220] sm:$0xff]
    %v99 = vld [vmem:[%s1 + $0x228] sm:$0xff]
    %v100 = vld [vmem:[%s1 + $0x230] sm:$0xff]
    %v101 = vld [vmem:[%s1 + $0x238] sm:$0xff]
    %v102 = vld [vmem:[%s1 + $0x240] sm:$0xff]
    %v103 = vld [vmem:[%s1 + $0x248] sm:$0xff]
    %v104 = vld [vmem:[%s1 + $0x250] sm:$0xff]
    %v105 = vld [vmem:[%s1 + $0x258] sm:$0xff]
    %v106 = vld [vmem:[%s1 + $0x260] sm:$0xff]
    %v107 = vld [vmem:[%s1 + $0x268] sm:$0xff]
    %v108 = vld [vmem:[%s1 + $0x270] sm:$0xff]
    %v109 = vld [vmem:[%s1 + $0x278] sm:$0xff]
    %v110 = vld [vmem:[%s1 + $0x280] sm:$0xff]
    %v111 = vld [vmem:[%s1 + $0x288] sm:$0xff]
    %v112 = vld [vmem:[%s1 + $0x290] sm:$0xff]
    %v113 = vld [vmem:[%s1 + $0x298] sm:$0xff]
    %v114 = vld [vmem:[%s1 + $0x2a0] sm:$0xff]
    %v115 = vld [vmem:[%s1 + $0x2a8] sm:$0xff]
    %v116 = vld [vmem:[%s1 + $0x2b0] sm:$0xff]
    %v117 = vld [vmem:[%s1 + $0x2b8] sm:$0xff]
    %v118 = vld [vmem:[%s1 + $0x2c0] sm:$0xff]
    %v119 = vld [vmem:[%s1 + $0x2c8] sm:$0xff]
    %v120 = vld [vmem:[%s1 + $0x2d0] sm:$0xff]
    %v121 = vld [vmem:[%s1 + $0x2d8] sm:$0xff]
    %v122 = vld [vmem:[%s1 + $0x2e0] sm:$0xff]
    %v123 = vld [vmem:[%s1 + $0x2e8] sm:$0xff]
    %v124 = vld [vmem:[%s1 + $0x2f0] sm:$0xff]
    %v125 = vld [vmem:[%s1 + $0x2f8] sm:$0xff]
    %v126 = vld [vmem:[%s1 + $0x300] sm:$0xff]
    %v127 = vld [vmem:[%s1 + $0x308] sm:$0xff]
    %v128 = vld [vmem:[%s1 + $0x310] sm:$0xff]
    %v129 = vld [vmem:[%s1 + $0x318] sm:$0xff]
    %v130 = vld [vmem:[%s1 + $0x320] sm:$0xff]
    %v131 = vld [vmem:[%s1 + $0x328] sm:$0xff]
    %v132 = vld [vmem:[%s1 + $0x330] sm:$0xff]
    %v133 = vld [vmem:[%s1 + $0x338] sm:$0xff]
    %v134 = vld [vmem:[%s1 + $0x340] sm:$0xff]
    %v135 = vld [vmem:[%s1 + $0x348] sm:$0xff]
    %v136 = vld [vmem:[%s1 + $0x350] sm:$0xff]
    %v137 = vld [vmem:[%s1 + $0x358] sm:$0xff]
    %v138 = vld [vmem:[%s1 + $0x360] sm:$0xff]
    %v139 = vld [vmem:[%s1 + $0x368] sm:$0xff]
    %v140 = vld [vmem:[%s1 + $0x370] sm:$0xff]
    %v141 = vld [vmem:[%s1 + $0x378] sm:$0xff]
    %v142 = vld [vmem:[%s1 + $0x380] sm:$0xff]
    %v143 = vld [vmem:[%s1 + $0x388] sm:$0xff]
    %v144 = vld [vmem:[%s1 + $0x390] sm:$0xff]
    %v145 = vld [vmem:[%s1 + $0x398] sm:$0xff]
    %v146 = vld [vmem:[%s1 + $0x3a0] sm:$0xff]
    %v147 = vld [vmem:[%s1 + $0x3a8] sm:$0xff]
    %v148 = vld [vmem:[%s1 + $0x3b0] sm:$0xff]
    %v149 = vld [vmem:[%s1 + $0x3b8] sm:$0xff]
    %v150 = vld [vmem:[%s1 + $0x3c0] sm:$0xff]
    %v151 = vld [vmem:[%s1 + $0x3c8] sm:$0xff]
    %v152 = vld [vmem:[%s1 + $0x3d0] sm:$0xff]
    %v153 = vld [vmem:[%s1 + $0x3d8] sm:$0xff]
    %v154 = vld [vmem:[%s1 + $0x3e0] sm:$0xff]
    %v155 = vld [vmem:[%s1 + $0x3e8] sm:$0xff]
    %v156 = vld [vmem:[%s1 + $0x3f0] sm:$0xff]
    %v157 = vld [vmem:[%s1 + $0x3f8] sm:$0xff]
    %v158 = vld [vmem:[%s2] sm:$0x1]
    %v160 = vlaneseq
    %v161 = vshrl.u32 %v160, 7
    %v162 = vsub.s32 0, %v161
    %v163 = vrot.slane %v158, %v162
    %v167 = vcombine.high %v28, %v28
    %v169 = vunpack.c.l.s4 1983009808
    %v170 = vunpack.c.0.s8 %v169
    %v171 = vlaneseq
    %v172 = vshrl.u32 %v171, 7
    %v173 = vsub.s32 %v170, %v172
    %v174 = vrot.slane %v28, %v173
    %v176 = vunpack.c.l.s4 1983009808
    %v177 = vunpack.c.0.s8 %v176
    %v178 = vlaneseq
    %v179 = vshrl.u32 %v178, 7
    %v180 = vsub.s32 %v177, %v179
    %v181 = vrot.slane %v167, %v180
    %v182 = vcombine.high %v174, %v174
    %v183 = vcombine.high %v181, %v181
    %v184 = vcombine.high %v29, %v29
    %v186 = vunpack.c.l.s4 1983009808
    %v187 = vunpack.c.0.s8 %v186
    %v188 = vlaneseq
    %v189 = vshrl.u32 %v188, 7
    %v190 = vsub.s32 %v187, %v189
    %v191 = vrot.slane %v29, %v190
    %v193 = vunpack.c.l.s4 1983009808
    %v194 = vunpack.c.0.s8 %v193
    %v195 = vlaneseq
    %v196 = vshrl.u32 %v195, 7
    %v197 = vsub.s32 %v194, %v196
    %v198 = vrot.slane %v184, %v197
    %v199 = vcombine.high %v191, %v191
    %v200 = vcombine.high %v198, %v198
    %209 = vmatprep.subr.mxu0 0.0
    %210 = vmatpush1.msra.mxu0 %v45
    %211 = vmatprep.subr.mxu0 0.0
    %212 = vmatpush1.msra.mxu0 %v44
    %213 = vmatprep.subr.mxu0 0.0
    %214 = vmatpush1.msra.mxu0 %v43
    %215 = vmatprep.subr.mxu0 0.0
    %216 = vmatpush1.msra.mxu0 %v42
    %217 = vmatprep.subr.mxu0 0.0
    %218 = vmatpush1.msra.mxu0 %v41
    %219 = vmatprep.subr.mxu0 0.0
    %220 = vmatpush1.msra.mxu0 %v40
    %221 = vmatprep.subr.mxu0 0.0
    %222 = vmatpush1.msra.mxu0 %v39
    %223 = vmatprep.subr.mxu0 0.0
    %224 = vmatpush1.msra.mxu0 %v38
    %225 = vmatprep.subr.mxu0 0.0
    %226 = vmatpush1.msra.mxu0 %v37
    %227 = vmatprep.subr.mxu0 0.0
    %228 = vmatpush1.msra.mxu0 %v36
    %229 = vmatprep.subr.mxu0 0.0
    %230 = vmatpush1.msra.mxu0 %v35
    %231 = vmatprep.subr.mxu0 0.0
    %232 = vmatpush1.msra.mxu0 %v34
    %233 = vmatprep.subr.mxu0 0.0
    %234 = vmatpush1.msra.mxu0 %v33
    %235 = vmatprep.subr.mxu0 0.0
    %236 = vmatpush1.msra.mxu0 %v32
    %237 = vmatprep.subr.mxu0 0.0
    %238 = vmatpush1.msra.mxu0 %v31
    %239 = vmatprep.subr.mxu0 0.0
    %240 = vmatpush1.msra.mxu0 %v30
    %241 = vmatprep.subr.mxu0 0.0
    %242 = vmatpush2.msra.mxu0 %v61
    %243 = vmatprep.subr.mxu0 0.0
    %244 = vmatpush2.msra.mxu0 %v60
    %245 = vmatprep.subr.mxu0 0.0
    %246 = vmatpush2.msra.mxu0 %v59
    %247 = vmatprep.subr.mxu0 0.0
    %248 = vmatpush2.msra.mxu0 %v58
    %249 = vmatprep.subr.mxu0 0.0
    %250 = vmatpush2.msra.mxu0 %v57
    %251 = vmatprep.subr.mxu0 0.0
    %252 = vmatpush2.msra.mxu0 %v56
    %253 = vmatprep.subr.mxu0 0.0
    %254 = vmatpush2.msra.mxu0 %v55
    %255 = vmatprep.subr.mxu0 0.0
    %256 = vmatpush2.msra.mxu0 %v54
    %257 = vmatprep.subr.mxu0 0.0
    %258 = vmatpush2.msra.mxu0 %v53
    %259 = vmatprep.subr.mxu0 0.0
    %260 = vmatpush2.msra.mxu0 %v52
    %261 = vmatprep.subr.mxu0 0.0
    %262 = vmatpush2.msra.mxu0 %v51
    %263 = vmatprep.subr.mxu0 0.0
    %264 = vmatpush2.msra.mxu0 %v50
    %265 = vmatprep.subr.mxu0 0.0
    %266 = vmatpush2.msra.mxu0 %v49
    %267 = vmatprep.subr.mxu0 0.0
    %268 = vmatpush2.msra.mxu0 %v48
    %269 = vmatprep.subr.mxu0 0.0
    %270 = vmatpush2.msra.mxu0 %v47
    %271 = vmatprep.subr.mxu0 0.0
    %272 = vmatpush2.msra.mxu0 %v46
    %273 = vmatprep.mubr.f32.mxu0 %v182
    %274 = vmatmul.mubr.f32.gmra.mxu0 %v174
    %v275 = vpop.f32.mrf.mxu0
    %v276 = vadd.f32 %v163, %v275
    %v277 = vpop.f32.mrf.mxu0
    %278 = vdwg.mxu0
    %279 = vmatprep.subr.mxu0 0.0
    %280 = vmatpush1.msra.mxu0 %v77
    %281 = vmatprep.subr.mxu0 0.0
    %282 = vmatpush1.msra.mxu0 %v76
    %283 = vmatprep.subr.mxu0 0.0
    %284 = vmatpush1.msra.mxu0 %v75
    %285 = vmatprep.subr.mxu0 0.0
    %286 = vmatpush1.msra.mxu0 %v74
    %287 = vmatprep.subr.mxu0 0.0
    %288 = vmatpush1.msra.mxu0 %v73
    %289 = vmatprep.subr.mxu0 0.0
    %290 = vmatpush1.msra.mxu0 %v72
    %291 = vmatprep.subr.mxu0 0.0
    %292 = vmatpush1.msra.mxu0 %v71
    %293 = vmatprep.subr.mxu0 0.0
    %294 = vmatpush1.msra.mxu0 %v70
    %295 = vmatprep.subr.mxu0 0.0
    %296 = vmatpush1.msra.mxu0 %v69
    %297 = vmatprep.subr.mxu0 0.0
    %298 = vmatpush1.msra.mxu0 %v68
    %299 = vmatprep.subr.mxu0 0.0
    %300 = vmatpush1.msra.mxu0 %v67
    %301 = vmatprep.subr.mxu0 0.0
    %302 = vmatpush1.msra.mxu0 %v66
    %303 = vmatprep.subr.mxu0 0.0
    %304 = vmatpush1.msra.mxu0 %v65
    %305 = vmatprep.subr.mxu0 0.0
    %306 = vmatpush1.msra.mxu0 %v64
    %307 = vmatprep.subr.mxu0 0.0
    %308 = vmatpush1.msra.mxu0 %v63
    %309 = vmatprep.subr.mxu0 0.0
    %310 = vmatpush1.msra.mxu0 %v62
    %311 = vmatprep.subr.mxu0 0.0
    %312 = vmatpush2.msra.mxu0 %v93
    %313 = vmatprep.subr.mxu0 0.0
    %314 = vmatpush2.msra.mxu0 %v92
    %315 = vmatprep.subr.mxu0 0.0
    %316 = vmatpush2.msra.mxu0 %v91
    %317 = vmatprep.subr.mxu0 0.0
    %318 = vmatpush2.msra.mxu0 %v90
    %319 = vmatprep.subr.mxu0 0.0
    %320 = vmatpush2.msra.mxu0 %v89
    %321 = vmatprep.subr.mxu0 0.0
    %322 = vmatpush2.msra.mxu0 %v88
    %323 = vmatprep.subr.mxu0 0.0
    %324 = vmatpush2.msra.mxu0 %v87
    %325 = vmatprep.subr.mxu0 0.0
    %326 = vmatpush2.msra.mxu0 %v86
    %327 = vmatprep.subr.mxu0 0.0
    %328 = vmatpush2.msra.mxu0 %v85
    %329 = vmatprep.subr.mxu0 0.0
    %330 = vmatpush2.msra.mxu0 %v84
    %331 = vmatprep.subr.mxu0 0.0
    %332 = vmatpush2.msra.mxu0 %v83
    %333 = vmatprep.subr.mxu0 0.0
    %334 = vmatpush2.msra.mxu0 %v82
    %335 = vmatprep.subr.mxu0 0.0
    %336 = vmatpush2.msra.mxu0 %v81
    %337 = vmatprep.subr.mxu0 0.0
    %338 = vmatpush2.msra.mxu0 %v80
    %339 = vmatprep.subr.mxu0 0.0
    %340 = vmatpush2.msra.mxu0 %v79
    %341 = vmatprep.subr.mxu0 0.0
    %342 = vmatpush2.msra.mxu0 %v78
    %343 = vmatprep.mubr.f32.mxu0 %v183
    %344 = vmatmul.mubr.f32.gmra.mxu0 %v181
    %v345 = vpop.f32.mrf.mxu0
    %v346 = vadd.f32 %v276, %v345
    %v347 = vpop.f32.mrf.mxu0
    %348 = vdwg.mxu0
    %349 = vmatprep.subr.mxu0 0.0
    %350 = vmatpush1.msra.mxu0 %v109
    %351 = vmatprep.subr.mxu0 0.0
    %352 = vmatpush1.msra.mxu0 %v108
    %353 = vmatprep.subr.mxu0 0.0
    %354 = vmatpush1.msra.mxu0 %v107
    %355 = vmatprep.subr.mxu0 0.0
    %356 = vmatpush1.msra.mxu0 %v106
    %357 = vmatprep.subr.mxu0 0.0
    %358 = vmatpush1.msra.mxu0 %v105
    %359 = vmatprep.subr.mxu0 0.0
    %360 = vmatpush1.msra.mxu0 %v104
    %361 = vmatprep.subr.mxu0 0.0
    %362 = vmatpush1.msra.mxu0 %v103
    %363 = vmatprep.subr.mxu0 0.0
    %364 = vmatpush1.msra.mxu0 %v102
    %365 = vmatprep.subr.mxu0 0.0
    %366 = vmatpush1.msra.mxu0 %v101
    %367 = vmatprep.subr.mxu0 0.0
    %368 = vmatpush1.msra.mxu0 %v100
    %369 = vmatprep.subr.mxu0 0.0
    %370 = vmatpush1.msra.mxu0 %v99
    %371 = vmatprep.subr.mxu0 0.0
    %372 = vmatpush1.msra.mxu0 %v98
    %373 = vmatprep.subr.mxu0 0.0
    %374 = vmatpush1.msra.mxu0 %v97
    %375 = vmatprep.subr.mxu0 0.0
    %376 = vmatpush1.msra.mxu0 %v96
    %377 = vmatprep.subr.mxu0 0.0
    %378 = vmatpush1.msra.mxu0 %v95
    %379 = vmatprep.subr.mxu0 0.0
    %380 = vmatpush1.msra.mxu0 %v94
    %381 = vmatprep.subr.mxu0 0.0
    %382 = vmatpush2.msra.mxu0 %v125
    %383 = vmatprep.subr.mxu0 0.0
    %384 = vmatpush2.msra.mxu0 %v124
    %385 = vmatprep.subr.mxu0 0.0
    %386 = vmatpush2.msra.mxu0 %v123
    %387 = vmatprep.subr.mxu0 0.0
    %388 = vmatpush2.msra.mxu0 %v122
    %389 = vmatprep.subr.mxu0 0.0
    %390 = vmatpush2.msra.mxu0 %v121
    %391 = vmatprep.subr.mxu0 0.0
    %392 = vmatpush2.msra.mxu0 %v120
    %393 = vmatprep.subr.mxu0 0.0
    %394 = vmatpush2.msra.mxu0 %v119
    %395 = vmatprep.subr.mxu0 0.0
    %396 = vmatpush2.msra.mxu0 %v118
    %397 = vmatprep.subr.mxu0 0.0
    %398 = vmatpush2.msra.mxu0 %v117
    %399 = vmatprep.subr.mxu0 0.0
    %400 = vmatpush2.msra.mxu0 %v116
    %401 = vmatprep.subr.mxu0 0.0
    %402 = vmatpush2.msra.mxu0 %v115
    %403 = vmatprep.subr.mxu0 0.0
    %404 = vmatpush2.msra.mxu0 %v114
    %405 = vmatprep.subr.mxu0 0.0
    %406 = vmatpush2.msra.mxu0 %v113
    %407 = vmatprep.subr.mxu0 0.0
    %408 = vmatpush2.msra.mxu0 %v112
    %409 = vmatprep.subr.mxu0 0.0
    %410 = vmatpush2.msra.mxu0 %v111
    %411 = vmatprep.subr.mxu0 0.0
    %412 = vmatpush2.msra.mxu0 %v110
    %413 = vmatprep.mubr.f32.mxu0 %v199
    %414 = vmatmul.mubr.f32.gmra.mxu0 %v191
    %v415 = vpop.f32.mrf.mxu0
    %v416 = vadd.f32 %v346, %v415
    %v417 = vpop.f32.mrf.mxu0
    %418 = vdwg.mxu0
    %419 = vmatprep.subr.mxu0 0.0
    %420 = vmatpush1.msra.mxu0 %v141
    %421 = vmatprep.subr.mxu0 0.0
    %422 = vmatpush1.msra.mxu0 %v140
    %423 = vmatprep.subr.mxu0 0.0
    %424 = vmatpush1.msra.mxu0 %v139
    %425 = vmatprep.subr.mxu0 0.0
    %426 = vmatpush1.msra.mxu0 %v138
    %427 = vmatprep.subr.mxu0 0.0
    %428 = vmatpush1.msra.mxu0 %v137
    %429 = vmatprep.subr.mxu0 0.0
    %430 = vmatpush1.msra.mxu0 %v136
    %431 = vmatprep.subr.mxu0 0.0
    %432 = vmatpush1.msra.mxu0 %v135
    %433 = vmatprep.subr.mxu0 0.0
    %434 = vmatpush1.msra.mxu0 %v134
    %435 = vmatprep.subr.mxu0 0.0
    %436 = vmatpush1.msra.mxu0 %v133
    %437 = vmatprep.subr.mxu0 0.0
    %438 = vmatpush1.msra.mxu0 %v132
    %439 = vmatprep.subr.mxu0 0.0
    %440 = vmatpush1.msra.mxu0 %v131
    %441 = vmatprep.subr.mxu0 0.0
    %442 = vmatpush1.msra.mxu0 %v130
    %443 = vmatprep.subr.mxu0 0.0
    %444 = vmatpush1.msra.mxu0 %v129
    %445 = vmatprep.subr.mxu0 0.0
    %446 = vmatpush1.msra.mxu0 %v128
    %447 = vmatprep.subr.mxu0 0.0
    %448 = vmatpush1.msra.mxu0 %v127
    %449 = vmatprep.subr.mxu0 0.0
    %450 = vmatpush1.msra.mxu0 %v126
    %451 = vmatprep.subr.mxu0 0.0
    %452 = vmatpush2.msra.mxu0 %v157
    %453 = vmatprep.subr.mxu0 0.0
    %454 = vmatpush2.msra.mxu0 %v156
    %455 = vmatprep.subr.mxu0 0.0
    %456 = vmatpush2.msra.mxu0 %v155
    %457 = vmatprep.subr.mxu0 0.0
    %458 = vmatpush2.msra.mxu0 %v154
    %459 = vmatprep.subr.mxu0 0.0
    %460 = vmatpush2.msra.mxu0 %v153
    %461 = vmatprep.subr.mxu0 0.0
    %462 = vmatpush2.msra.mxu0 %v152
    %463 = vmatprep.subr.mxu0 0.0
    %464 = vmatpush2.msra.mxu0 %v151
    %465 = vmatprep.subr.mxu0 0.0
    %466 = vmatpush2.msra.mxu0 %v150
    %467 = vmatprep.subr.mxu0 0.0
    %468 = vmatpush2.msra.mxu0 %v149
    %469 = vmatprep.subr.mxu0 0.0
    %470 = vmatpush2.msra.mxu0 %v148
    %471 = vmatprep.subr.mxu0 0.0
    %472 = vmatpush2.msra.mxu0 %v147
    %473 = vmatprep.subr.mxu0 0.0
    %474 = vmatpush2.msra.mxu0 %v146
    %475 = vmatprep.subr.mxu0 0.0
    %476 = vmatpush2.msra.mxu0 %v145
    %477 = vmatprep.subr.mxu0 0.0
    %478 = vmatpush2.msra.mxu0 %v144
    %479 = vmatprep.subr.mxu0 0.0
    %480 = vmatpush2.msra.mxu0 %v143
    %481 = vmatprep.subr.mxu0 0.0
    %482 = vmatpush2.msra.mxu0 %v142
    %483 = vmatprep.mubr.f32.mxu0 %v200
    %484 = vmatmul.mubr.f32.gmra.mxu0 %v198
    %v485 = vpop.f32.mrf.mxu0
    %v486 = vadd.f32 %v416, %v485
    %v487 = vpop.f32.mrf.mxu0
    %488 = vdwg.mxu0
    %v489 = vmul.f32 %v486, 0.01
    %v490 = vmax.f32 %v486, %v489
    %vm491 = vcmask 254976
    %492 = vst.msk [vmem:[%s6] sm:$0x3] %vm491, %v490
    %v493 = vld [vmem:[%s3] sm:$0xff]
    %v494 = vld [vmem:[%s3 + $0x8] sm:$0xff]
    %v495 = vld [vmem:[%s3 + $0x10] sm:$0xff]
    %v496 = vld [vmem:[%s3 + $0x18] sm:$0xff]
    %v497 = vld [vmem:[%s4] sm:$0x1]
    %v499 = vlaneseq
    %v500 = vshrl.u32 %v499, 7
    %v501 = vsub.s32 0, %v500
    %v502 = vrot.slane %v497, %v501
    %vm504 = vcmask 261120
    %v506 = vsel %vm504, %v490, 0
    %508 = vmatprep.subr.mxu0 0.0
    %509 = vmatpush1.msra.mxu0 0.0
    %510 = vmatprep.subr.mxu0 0.0
    %511 = vmatpush1.msra.mxu0 0.0
    %512 = vmatprep.subr.mxu0 0.0
    %513 = vmatpush1.msra.mxu0 0.0
    %514 = vmatprep.subr.mxu0 0.0
    %515 = vmatpush1.msra.mxu0 0.0
    %516 = vmatprep.subr.mxu0 0.0
    %517 = vmatpush1.msra.mxu0 0.0
    %518 = vmatprep.subr.mxu0 0.0
    %519 = vmatpush1.msra.mxu0 0.0
    %520 = vmatprep.subr.mxu0 0.0
    %521 = vmatpush1.msra.mxu0 0.0
    %522 = vmatprep.subr.mxu0 0.0
    %523 = vmatpush1.msra.mxu0 0.0
    %524 = vmatprep.subr.mxu0 0.0
    %525 = vmatpush1.msra.mxu0 0.0
    %526 = vmatprep.subr.mxu0 0.0
    %527 = vmatpush1.msra.mxu0 0.0
    %528 = vmatprep.subr.mxu0 0.0
    %529 = vmatpush1.msra.mxu0 0.0
    %530 = vmatprep.subr.mxu0 0.0
    %531 = vmatpush1.msra.mxu0 0.0
    %532 = vmatprep.subr.mxu0 0.0
    %533 = vmatpush1.msra.mxu0 %v496
    %534 = vmatprep.subr.mxu0 0.0
    %535 = vmatpush1.msra.mxu0 %v495
    %536 = vmatprep.subr.mxu0 0.0
    %537 = vmatpush1.msra.mxu0 %v494
    %538 = vmatprep.subr.mxu0 0.0
    %539 = vmatpush1.msra.mxu0 %v493
    %540 = vmatprep.subr.mxu0 0.0
    %541 = vmatpush2.msra.mxu0 0.0
    %542 = vmatprep.subr.mxu0 0.0
    %543 = vmatpush2.msra.mxu0 0.0
    %544 = vmatprep.subr.mxu0 0.0
    %545 = vmatpush2.msra.mxu0 0.0
    %546 = vmatprep.subr.mxu0 0.0
    %547 = vmatpush2.msra.mxu0 0.0
    %548 = vmatprep.subr.mxu0 0.0
    %549 = vmatpush2.msra.mxu0 0.0
    %550 = vmatprep.subr.mxu0 0.0
    %551 = vmatpush2.msra.mxu0 0.0
    %552 = vmatprep.subr.mxu0 0.0
    %553 = vmatpush2.msra.mxu0 0.0
    %554 = vmatprep.subr.mxu0 0.0
    %555 = vmatpush2.msra.mxu0 0.0
    %556 = vmatprep.subr.mxu0 0.0
    %557 = vmatpush2.msra.mxu0 0.0
    %558 = vmatprep.subr.mxu0 0.0
    %559 = vmatpush2.msra.mxu0 0.0
    %560 = vmatprep.subr.mxu0 0.0
    %561 = vmatpush2.msra.mxu0 0.0
    %562 = vmatprep.subr.mxu0 0.0
    %563 = vmatpush2.msra.mxu0 0.0
    %564 = vmatprep.subr.mxu0 0.0
    %565 = vmatpush2.msra.mxu0 0.0
    %566 = vmatprep.subr.mxu0 0.0
    %567 = vmatpush2.msra.mxu0 0.0
    %568 = vmatprep.subr.mxu0 0.0
    %569 = vmatpush2.msra.mxu0 0.0
    %570 = vmatprep.subr.mxu0 0.0
    %571 = vmatpush2.msra.mxu0 0.0
    %572 = vmatprep.mubr.f32.mxu0 0.0
    %573 = vmatmul.mubr.f32.gmra.mxu0 %v506
    %v574 = vpop.f32.mrf.mxu0
    %v575 = vadd.f32 %v502, %v574
    %v576 = vpop.f32.mrf.mxu0
    %577 = vdwg.mxu0
    %578 = vst [vmem:[#allocation2] sm:$0x3] %v575
    %v579 = vld [vmem:[%s5] sm:$0x3]
    %v580 = vsub.f32 %v575, %v579
    %v581 = vmul.f32 %v580, %v580
    %vm582 = vcmask 1041408
    %v583 = vsel %vm582, %v581, 0.0
    %584 = vadd.xlane.f32.xlu0 %v583
    %v585 = vpop.xlane.xlu0 %584
    %v586 = vrot.slane %v585, 4
    %v587 = vadd.f32 %v585, %v586
    %v588 = vrot.slane %v587, 2
    %v589 = vadd.f32 %v587, %v588
    %v590 = vrot.slane %v589, 1
    %v591 = vadd.f32 %v589, %v590
    %s592 = vtos %v591
    %s593 = smul.f32 %s592, 0.00390625
    %s594 = scalar_lea.smem [#allocation5], 0
    %595 = sst [smem:[%s594]] %s593
    // Predicated region
    $region26: #{pattern_mapper_forward.1} parent=1 // pred_check
      _
    $region27: #{pattern_mapper_forward.1} parent=1 // pred_check_branch
      %597 = sbr.rel (0) target = $region29
    $region28: #{pattern_mapper_forward.1} parent=1 // pred_region
      _
    $region29: #{pattern_mapper_forward.1} parent=1 // pred_fallthru
      _
    // Predicated region
    $region30: #{pattern_mapper_forward.1} parent=1 // pred_check
      _
    $region31: #{pattern_mapper_forward.1} parent=1 // pred_check_branch
      %599 = sbr.rel (0) target = $region33
    $region32: #{pattern_mapper_forward.1} parent=1 // pred_region
      %s601 = ssub.s32 32, 32
      %602 = vsyncadd [#allocation3], %s601
      %s604 = sshll.u32 [#allocation2], 4
      %s605 = int_to_ptr.vmem [resolvable:$true] %s604
      %607 = dma.vmem_to_hbm [thread:$0]  %s605, 32, %s7, [#allocation3]
    $region33: #{pattern_mapper_forward.1} parent=1 // pred_fallthru
      _
    // Predicated region
    $region34: #{pattern_mapper_forward.1} parent=1 // pred_check
      _
    $region35: #{pattern_mapper_forward.1} parent=1 // pred_check_branch
      %609 = sbr.rel (0) target = $region37
    $region36: #{pattern_mapper_forward.1} parent=1 // pred_region
      %s611 = ssub.s32 16, 16
      %612 = vsyncadd [#allocation4], %s611
      %615 = dma.smem_to_hbm [#allocation5], 16, %s8, [#allocation4]
    $region37: #{pattern_mapper_forward.1} parent=1 // pred_fallthru
      _
    // Predicated region
    $region38: #{pattern_mapper_forward.1} parent=1 // pred_check
      _
    $region39: #{pattern_mapper_forward.1} parent=1 // pred_check_branch
      %617 = sbr.rel (0) target = $region41
    $region40: #{pattern_mapper_forward.1} parent=1 // pred_region
      _
    $region41: #{pattern_mapper_forward.1} parent=1 // pred_fallthru
      _
    // Predicated region
    $region42: #{pattern_mapper_forward.1} parent=1 // pred_check
      _
    $region43: #{pattern_mapper_forward.1} parent=1 // pred_check_branch
      %619 = sbr.rel (0) target = $region45
    $region44: #{pattern_mapper_forward.1} parent=1 // pred_region
      %620 = dma.done [#allocation3], 32
    $region45: #{pattern_mapper_forward.1} parent=1 // pred_fallthru
      _
    // Predicated region
    $region46: #{pattern_mapper_forward.1} parent=1 // pred_check
      _
    $region47: #{pattern_mapper_forward.1} parent=1 // pred_check_branch
      %622 = sbr.rel (0) target = $region49
    $region48: #{pattern_mapper_forward.1} parent=1 // pred_region
      %623 = dma.done [#allocation4], 16
    $region49: #{pattern_mapper_forward.1} parent=1 // pred_fallthru
      _
    %624 = sfence
    %625 = vsyncpa [#allocation3], 1
    %626 = vsyncpa [#allocation4], 1

</llo_original>
